<compile_context>
chip_gen: v6e
topology: v6e:2x2x1
jax: 0.10.0
libtpu: 0.0.40
codegen_flags: <defaults>
</compile_context>

<pallas_src>
import functools
import math

import jax
import jax.numpy as jnp
from jax.experimental import pallas as pl
from jax.experimental.pallas import tpu as pltpu


def _sinusoidal_kernel(x_ref, ftile_ref, sinmask_ref, o_ref, *, fold, dim):
    """One row-block of the (lane-folded) sinusoidal embedding.

    x_ref:       (tb, fold)       f32  timesteps; lane g holds original row r*fold+g
    ftile_ref:   (1, fold*dim)    f32  `fold` copies of [freqs, freqs]
    sinmask_ref: (1, fold*dim)    f32  1.0 on sin lanes, 0.0 on cos lanes
    o_ref:       (tb, fold*dim)   f32  folded output block (single full-width store)
    """
    tb = o_ref.shape[0]
    width = fold * dim

    x = x_ref[...]                                               # (tb, fold)

    # Broadcast each timestep across its dim-wide group of lanes.  Only plain
    # VPU elementwise ops (iota / compare / select / broadcast) -> safe lowering.
    xb = jnp.broadcast_to(x[:, 0:1], (tb, width))
    if fold > 1:
        lane = jax.lax.broadcasted_iota(jnp.int32, (tb, width), 1)
        for g in range(1, fold):
            xg = jnp.broadcast_to(x[:, g:g + 1], (tb, width))
            xb = jnp.where(lane >= g * dim, xg, xb)

    args = xb * ftile_ref[...]                                   # (tb, width)
    m = sinmask_ref[...]                                         # (1, width), broadcasts

    # Exact sin/cos; arithmetic blend keeps everything elementwise and lets the
    # whole block go out in one lane-dense store.
    o_ref[...] = m * jnp.sin(args) + (1.0 - m) * jnp.cos(args)


def sinusoidal_pos_emb(x: jax.Array, dim: int,
                       *, vmem_budget_bytes: int = 8 * 1024 * 1024) -> jax.Array:
    """x: (B,) timesteps -> (B, dim) float32, matching SinusoidalPosEmb.forward."""
    assert dim % 2 == 0, "dim must be even"
    assert dim >= 4, "dim must be >= 4 (half_dim - 1 == 0 otherwise)"
    half = dim // 2
    b = int(x.shape[0])

    # Lane folding: pack `fold` consecutive rows into the 128-lane axis when
    # dim < 128, so vector stores and the writeback DMA are lane-dense.  The
    # reshapes outside the kernel are free row-major relabels.  Fall back to
    # fold=1 when shapes don't divide (keeps the no-pad / no-slice guarantee).
    if dim < 128 and 128 % dim == 0 and b % (128 // dim) == 0 and (128 // dim) > 1:
        fold = 128 // dim
    else:
        fold = 1
    width = fold * dim
    rows = b // fold

    x2d = x.astype(jnp.float32).reshape(rows, fold)

    # Constants, computed once in the wrapper (constant-folded for static dim).
    scale = math.log(10000.0) / (half - 1)
    freqs = jnp.exp(jnp.arange(half, dtype=jnp.float32) * (-scale))       # (half,)
    fcat = jnp.concatenate([freqs, freqs])                                 # (dim,)
    ftile = jnp.tile(fcat, fold).reshape(1, width)
    sinmask = jnp.tile(
        jnp.concatenate([jnp.ones((half,), jnp.float32),
                         jnp.zeros((half,), jnp.float32)]), fold).reshape(1, width)

    # Byte-sized row tile: account for BOTH the double-buffered output block
    # (4*width B/row) and the lane-padded x block (padded to 128 lanes ->
    # 512 B/row regardless of `fold`).  With the default 8 MiB budget this
    # stays well under the v5e 16 MiB scoped-VMEM default and v7x's 64 MiB
    # physical VMEM, so no vmem_limit override is needed, and output blocks
    # land in the measured ~2 MiB sweet spot.  Small problems become a single
    # block (grid=1, no per-step overhead); large B gives grid >= 2 so the
    # "parallel" axis can feed both v7x TensorCores.
    per_row_vmem = 2 * (4 * width + 4 * 128)
    budget_rows = max(8, (vmem_budget_bytes // per_row_vmem) // 8 * 8)
    tb = rows if rows <= budget_rows else budget_rows
    grid = pl.cdiv(rows, tb)          # ragged last block is clipped by Pallas

    kernel = functools.partial(_sinusoidal_kernel, fold=fold, dim=dim)
    out = pl.pallas_call(
        kernel,
        out_shape=jax.ShapeDtypeStruct((rows, width), jnp.float32),
        grid_spec=pltpu.PrefetchScalarGridSpec(
            num_scalar_prefetch=0,
            grid=(grid,),
            in_specs=[
                pl.BlockSpec((tb, fold), lambda i: (i, 0)),     # timesteps row block
                pl.BlockSpec((1, width), lambda i: (0, 0)),     # tiled freqs (const)
                pl.BlockSpec((1, width), lambda i: (0, 0)),     # sin/cos mask (const)
            ],
            out_specs=pl.BlockSpec((tb, width), lambda i: (i, 0)),
        ),
        compiler_params=pltpu.CompilerParams(
            dimension_semantics=("parallel",),   # shard row tiles across TCs on v7x
        ),
    )(x2d, ftile, sinmask)

    return out.reshape(b, dim)


def _reference(x: jax.Array, dim: int) -> jax.Array:
    half = dim // 2
    emb = math.log(10000.0) / (half - 1)
    emb = jnp.exp(jnp.arange(half, dtype=jnp.float32) * -emb)
    emb = x.astype(jnp.float32)[:, None] * emb[None, :]
    return jnp.concatenate([jnp.sin(emb), jnp.cos(emb)], axis=-1)


if __name__ == "__main__":
    key = jax.random.PRNGKey(0)

    # Small, module-consistent shapes: batch of 8 diffusion timesteps, dim=32.
    B, DIM = 8, 32
    x = jax.random.uniform(key, (B,), dtype=jnp.float32, minval=0.0, maxval=1000.0)
    out = jax.block_until_ready(sinusoidal_pos_emb(x, DIM))
    assert out.shape == (B, DIM)
    # Large args (~1e3 rad): allow for range-reduction differences between the
    # in-kernel sin/cos lowering and XLA's reference implementation.
    assert jnp.allclose(out, _reference(x, DIM), atol=5e-4, rtol=0.0), "mismatch (folded path)"

    # Tight-tolerance check with small timesteps (no range-reduction ambiguity).
    xs = jax.random.uniform(jax.random.PRNGKey(1), (B,), dtype=jnp.float32,
                            minval=0.0, maxval=3.0)
    outs = jax.block_until_ready(sinusoidal_pos_emb(xs, DIM))
    assert jnp.allclose(outs, _reference(xs, DIM), atol=1e-5, rtol=1e-5), "mismatch (tight)"

    # Ragged batch: B % fold != 0 exercises the fold=1 path, and a tiny VMEM
    # budget forces grid=2 with a clipped last block (no padding, no slicing).
    B2 = 37
    x2 = jax.random.uniform(jax.random.PRNGKey(2), (B2,), dtype=jnp.float32,
                            minval=0.0, maxval=100.0)
    out2 = jax.block_until_ready(sinusoidal_pos_emb(x2, DIM, vmem_budget_bytes=32 * 1024))
    assert out2.shape == (B2, DIM)
    assert jnp.allclose(out2, _reference(x2, DIM), atol=5e-4, rtol=0.0), "mismatch (ragged path)"

    # dim >= 128 path (no folding; lane-dense store by construction).
    B3, DIM3 = 16, 256
    x3 = jax.random.uniform(jax.random.PRNGKey(3), (B3,), dtype=jnp.float32,
                            minval=0.0, maxval=1000.0)
    out3 = jax.block_until_ready(sinusoidal_pos_emb(x3, DIM3))
    assert out3.shape == (B3, DIM3)
    assert jnp.allclose(out3, _reference(x3, DIM3), atol=5e-4, rtol=0.0), "mismatch (wide path)"

    print("KERNEL_OK")
</pallas_src>

<mosaic_0001>
module attributes {stable_mosaic.version = 11 : i64} {
  func.func @_sinusoidal_kernel(%arg0: i32, %arg1: memref<2x4xf32, #tpu.memory_space<vmem>>, %arg2: memref<1x128xf32, #tpu.memory_space<vmem>>, %arg3: memref<1x128xf32, #tpu.memory_space<vmem>>, %arg4: memref<2x128xf32, #tpu.memory_space<vmem>>) attributes {dimension_semantics = [#tpu.dimension_semantics<parallel>], iteration_bounds = array<i64: 1>, scalar_prefetch = 0 : i64, scratch_operands = 0 : i64, tpu.core_type = #tpu.core_type<tc>, window_params = [{transform_indices = @transform_0, window_bounds = array<i64: 2, 4>}, {pipeline_mode = #tpu.pipeline_mode<synchronous>, transform_indices = @transform_1, window_bounds = array<i64: 1, 128>}, {pipeline_mode = #tpu.pipeline_mode<synchronous>, transform_indices = @transform_2, window_bounds = array<i64: 1, 128>}, {transform_indices = @transform_3, window_bounds = array<i64: 2, 128>}]} {
    %c0 = arith.constant 0 : index
    %c0_0 = arith.constant 0 : index
    %0 = vector.load %arg1[%c0, %c0_0] : memref<2x4xf32, #tpu.memory_space<vmem>>, vector<2x4xf32>
    %1 = vector.extract_strided_slice %0 {offsets = [0, 0], sizes = [2, 1], strides = [1, 1]} : vector<2x4xf32> to vector<2x1xf32>
    %2 = vector.shape_cast %1 : vector<2x1xf32> to vector<2x1xf32>
    %3 = vector.broadcast %2 : vector<2x1xf32> to vector<2x128xf32>
    %4 = tpu.iota {dimensions = array<i32: 1>} : vector<2x128xi32>
    %5 = vector.extract_strided_slice %0 {offsets = [0, 1], sizes = [2, 1], strides = [1, 1]} : vector<2x4xf32> to vector<2x1xf32>
    %6 = vector.shape_cast %5 : vector<2x1xf32> to vector<2x1xf32>
    %7 = vector.broadcast %6 : vector<2x1xf32> to vector<2x128xf32>
    %c32_i32 = arith.constant 32 : i32
    %8 = vector.broadcast %c32_i32 : i32 to vector<2x128xi32>
    %9 = arith.cmpi sge, %4, %8 : vector<2x128xi32>
    %10 = arith.select %9, %7, %3 : vector<2x128xi1>, vector<2x128xf32>
    %11 = vector.extract_strided_slice %0 {offsets = [0, 2], sizes = [2, 1], strides = [1, 1]} : vector<2x4xf32> to vector<2x1xf32>
    %12 = vector.shape_cast %11 : vector<2x1xf32> to vector<2x1xf32>
    %13 = vector.broadcast %12 : vector<2x1xf32> to vector<2x128xf32>
    %c64_i32 = arith.constant 64 : i32
    %14 = vector.broadcast %c64_i32 : i32 to vector<2x128xi32>
    %15 = arith.cmpi sge, %4, %14 : vector<2x128xi32>
    %16 = arith.select %15, %13, %10 : vector<2x128xi1>, vector<2x128xf32>
    %17 = vector.extract_strided_slice %0 {offsets = [0, 3], sizes = [2, 1], strides = [1, 1]} : vector<2x4xf32> to vector<2x1xf32>
    %18 = vector.shape_cast %17 : vector<2x1xf32> to vector<2x1xf32>
    %19 = vector.broadcast %18 : vector<2x1xf32> to vector<2x128xf32>
    %c96_i32 = arith.constant 96 : i32
    %20 = vector.broadcast %c96_i32 : i32 to vector<2x128xi32>
    %21 = arith.cmpi sge, %4, %20 : vector<2x128xi32>
    %22 = arith.select %21, %19, %16 : vector<2x128xi1>, vector<2x128xf32>
    %c0_1 = arith.constant 0 : index
    %c0_2 = arith.constant 0 : index
    %23 = vector.load %arg2[%c0_1, %c0_2] : memref<1x128xf32, #tpu.memory_space<vmem>>, vector<1x128xf32>
    %24 = vector.broadcast %23 : vector<1x128xf32> to vector<2x128xf32>
    %25 = arith.mulf %22, %24 : vector<2x128xf32>
    %c0_3 = arith.constant 0 : index
    %c0_4 = arith.constant 0 : index
    %26 = vector.load %arg3[%c0_3, %c0_4] : memref<1x128xf32, #tpu.memory_space<vmem>>, vector<1x128xf32>
    %27 = math.sin %25 : vector<2x128xf32>
    %28 = vector.broadcast %26 : vector<1x128xf32> to vector<2x128xf32>
    %29 = arith.mulf %28, %27 : vector<2x128xf32>
    %cst = arith.constant 1.000000e+00 : f32
    %30 = vector.broadcast %cst : f32 to vector<1x128xf32>
    %31 = arith.subf %30, %26 : vector<1x128xf32>
    %32 = math.cos %25 : vector<2x128xf32>
    %33 = vector.broadcast %31 : vector<1x128xf32> to vector<2x128xf32>
    %34 = arith.mulf %33, %32 : vector<2x128xf32>
    %35 = arith.addf %29, %34 : vector<2x128xf32>
    %c0_5 = arith.constant 0 : index
    %c0_6 = arith.constant 0 : index
    %36 = vector.load %arg4[%c0_5, %c0_6] : memref<2x128xf32, #tpu.memory_space<vmem>>, vector<2x128xf32>
    tpu.vector_store %arg4[%c0_5, %c0_6], %35 {strides = array<i32>} : memref<2x128xf32, #tpu.memory_space<vmem>>, vector<2x128xf32>,
    return
  }
  func.func @transform_0(%arg0: i32) -> (i32, i32) {
    %c0_i32 = arith.constant 0 : i32
    %c0_i32_0 = arith.constant 0 : i32
    return %arg0, %c0_i32 : i32, i32
  }
  func.func @transform_1(%arg0: i32) -> (i32, i32) {
    %c0_i32 = arith.constant 0 : i32
    %c0_i32_0 = arith.constant 0 : i32
    %c0_i32_1 = arith.constant 0 : i32
    return %c0_i32, %c0_i32_0 : i32, i32
  }
  func.func @transform_2(%arg0: i32) -> (i32, i32) {
    %c0_i32 = arith.constant 0 : i32
    %c0_i32_0 = arith.constant 0 : i32
    %c0_i32_1 = arith.constant 0 : i32
    return %c0_i32, %c0_i32_0 : i32, i32
  }
  func.func @transform_3(%arg0: i32) -> (i32, i32) {
    %c0_i32 = arith.constant 0 : i32
    %c0_i32_0 = arith.constant 0 : i32
    return %arg0, %c0_i32 : i32, i32
  }
}

</mosaic_0001>

<llo_original>
// kernel: tpu_custom_call.1
$region0: #{tpu_custom_call.1}
  #allocation0 [shape = 'u32[]', space=smem, size = 0x4, offset = 0x4, fixed_abs, tag = 'smem constant byte address 0x4 - core index']
  #allocation1 [shape = 'u32[144,128]{1,0:T(1,128)}', space=vmem, size = 0x12000, scoped, tag = 'internal scratch']
  %s0 = inlined_call_operand.hbm [shape: f32[2,4], index: 0, kind: input, shape index: {}]
  %s1 = inlined_call_operand.vmem [shape: f32[1,128], index: 1, kind: input, shape index: {}]
  %s2 = inlined_call_operand.vmem [shape: f32[1,128], index: 2, kind: input, shape index: {}]
  %s3 = inlined_call_operand.hbm [shape: f32[2,128], index: 3, kind: output, shape index: {}]
  %s4 = sld [smem:[#allocation0]]
  $region26: #{tpu_custom_call.1} parent=0
    _
  %s6 = ssub.s32 1, %s4
  %s7 = scalar_select 0, %s6, %s4
  $region1: #{tpu_custom_call.1} parent=0
    #allocation2 [shape = 'u8[1024]{0}', space=vmem, size = 0x400, scoped, tag = 'input window, operand 0, single buffered']
    #allocation3 [shape = 's32[1]{0}', space=sflag, size = 0x4, scoped, tag = 'scoped memory for tpu_custom_call.1']
    #allocation4 [shape = 's32[1]{0}', space=sflag, size = 0x4, scoped, tag = 'scoped memory for tpu_custom_call.1']
    #allocation5 [shape = 'u8[1024]{0}', space=vmem, size = 0x400, scoped, tag = 'output window, operand 0, single buffered']
    %8 = vsyncpa [#allocation3], 0
    %9 = vsyncpa [#allocation4], 0
    // Predicated region
    $region2: #{tpu_custom_call.1} parent=1 // pred_check
      _
    $region3: #{tpu_custom_call.1} parent=1 // pred_check_branch
      %11 = sbr.rel (0) target = $region5
    $region4: #{tpu_custom_call.1} parent=1 // pred_region
      %s13 = ssub.s32 32, 32
      %14 = vsyncadd [#allocation3], %s13
      %s16 = sshll.u32 [#allocation2], 4
      %s17 = int_to_ptr.vmem [resolvable:$true] %s16
      %19 = dma.hbm_to_vmem [thread:$0]  %s0, 32, %s17, [#allocation3]
    $region5: #{tpu_custom_call.1} parent=1 // pred_fallthru
      _
    // Predicated region
    $region6: #{tpu_custom_call.1} parent=1 // pred_check
      _
    $region7: #{tpu_custom_call.1} parent=1 // pred_check_branch
      %21 = sbr.rel (0) target = $region9
    $region8: #{tpu_custom_call.1} parent=1 // pred_region
      _
    $region9: #{tpu_custom_call.1} parent=1 // pred_fallthru
      _
    // Predicated region
    $region10: #{tpu_custom_call.1} parent=1 // pred_check
      _
    $region11: #{tpu_custom_call.1} parent=1 // pred_check_branch
      %23 = sbr.rel (0) target = $region13
    $region12: #{tpu_custom_call.1} parent=1 // pred_region
      _
    $region13: #{tpu_custom_call.1} parent=1 // pred_fallthru
      _
    // Predicated region
    $region14: #{tpu_custom_call.1} parent=1 // pred_check
      _
    $region15: #{tpu_custom_call.1} parent=1 // pred_check_branch
      %25 = sbr.rel (0) target = $region17
    $region16: #{tpu_custom_call.1} parent=1 // pred_region
      %26 = dma.done [#allocation3], 32
    $region17: #{tpu_custom_call.1} parent=1 // pred_fallthru
      _
    %v27 = vld [vmem:[#allocation2] sm:$0x3]
    %29 = vset.pattern.permute.xlu0 0
    %30 = vperm.xlu0 %29, %v27
    %v31 = vpop.permute.xlu0 %30
    %v33 = vlaneseq
    %v34 = vand.u32 %v33, 127
    %35 = vset.pattern.permute.xlu0 1
    %36 = vperm.xlu0 %35, %v27
    %v37 = vpop.permute.xlu0 %36
    %vm39 = vcmp.ge.s32.totalorder %v34, 32
    %v40 = vsel %vm39, %v37, %v31
    %41 = vset.pattern.permute.xlu0 2
    %42 = vperm.xlu0 %41, %v27
    %v43 = vpop.permute.xlu0 %42
    %vm45 = vcmp.ge.s32.totalorder %v34, 64
    %v46 = vsel %vm45, %v43, %v40
    %47 = vset.pattern.permute.xlu0 3
    %48 = vperm.xlu0 %47, %v27
    %v49 = vpop.permute.xlu0 %48
    %vm51 = vcmp.ge.s32.totalorder %v34, 96
    %v52 = vsel %vm51, %v49, %v46
    %v53 = vld [vmem:[%s1] sm:$0x1]
    %v55 = vlaneseq
    %v56 = vshrl.u32 %v55, 7
    %v57 = vsub.s32 0, %v56
    %v58 = vrot.slane %v53, %v57
    %v60 = vmul.f32 %v52, %v58
    %v61 = vld [vmem:[%s2] sm:$0x1]
    %v62 = vand.u32 2147483647, %v60
    %vm63 = vcmp.le.f32.partialorder %v62, 0.7853982
    %vm64 = vcmp.lt.s32.totalorder %v60, 0
    %v65 = vand.u32 %v60, 2139095040
    %v66 = vshrl.u32 %v65, 23
    %v67 = vsub.s32 %v66, 127
    %v68 = vand.u32 2147483647, %v60
    %v69 = vand.u32 %v68, 8388607
    %v70 = vor.u32 %v69, 8388608
    %v71 = vsub.s32 0, %v70
    %v72 = vadd.s32 %v67, 1
    %vm73 = vcmp.gt.s32.totalorder %v72, 0
    %v74 = vsel %vm73, %v72, 0
    %v75 = vshrl.u32 %v74, 5
    %v76 = vand.u32 %v74, 31
    %v77 = vsub.s32 32, %v76
    %v78 = vshrl.u32 683565275, %v77
    %v79 = vshll.u32 683565275, %v76
    %v80 = vshrl.u32 2475754826, %v77
    %v81 = vor.u32 %v79, %v80
    %v82 = vshll.u32 2475754826, %v76
    %v83 = vshrl.u32 2131351028, %v77
    %v84 = vor.u32 %v82, %v83
    %v85 = vshll.u32 2131351028, %v76
    %v86 = vshrl.u32 2102212464, %v77
    %v87 = vor.u32 %v85, %v86
    %v88 = vshll.u32 2102212464, %v76
    %v89 = vshrl.u32 920167782, %v77
    %v90 = vor.u32 %v88, %v89
    %v91 = vshll.u32 920167782, %v76
    %v92 = vshrl.u32 1326507024, %v77
    %v93 = vor.u32 %v91, %v92
    %vm94 = vcmp.lt.s32.totalorder %v75, 1
    %vm95 = vcmp.lt.s32.totalorder %v75, 2
    %vm96 = vcmp.lt.s32.totalorder %v75, 3
    %vm97 = vcmp.lt.s32.totalorder %v75, 4
    %v98 = vsel %vm94, %v78, %v81
    %v99 = vsel %vm97, %v87, 2102212464
    %v100 = vsel %vm96, %v84, %v99
    %v101 = vsel %vm95, %v98, %v100
    %v102 = vsel %vm94, %v81, %v84
    %v103 = vsel %vm97, %v90, 920167782
    %v104 = vsel %vm96, %v87, %v103
    %v105 = vsel %vm95, %v102, %v104
    %v106 = vsel %vm94, %v84, %v87
    %v107 = vsel %vm97, %v93, 1326507024
    %v108 = vsel %vm96, %v90, %v107
    %v109 = vsel %vm95, %v106, %v108
    %v110 = vshll.u32 %v70, 8
    %v111 = vmul.u32.u64.compose %v110, %v109
    %v112 = vextract.low.u32 %v111
    %v113 = vextract.high.u32 %v111
    %v114 = vmul.u32.u64.compose %v110, %v105
    %v115 = vextract.low.u32 %v114
    %v116 = vextract.high.u32 %v114
    %v117 = vmul.u32 %v110, %v101
    %v118 = vadd.s32 %v113, %v115
    %vm119 = vc.u32 %v113, %v115
    %v120 = vadd.s32 %v116, 1
    %v121 = vsel %vm119, %v120, %v116
    %v122 = vadd.s32 %v117, %v121
    %v123 = vadd.s32 %v122, 536870912
    %v124 = vshrl.u32 %v123, 30
    %v125 = vshll.u32 %v124, 30
    %v126 = vsub.s32 %v122, %v125
    %vm127 = vcmp.lt.s32.totalorder %v126, 0
    %v128 = vsub.s32 0, %v126
    %v129 = vsel %vm127, %v128, %v126
    %v130 = vclz %v129
    %v131 = vsub.s32 %v130, 2
    %vm132 = vcmp.gt.s32.totalorder 0, %v131
    %v133 = vsel %vm132, 0, %v131
    %v134 = vsub.s32 32, %v133
    %v135 = vshll.u32 %v126, %v133
    %v136 = vshrl.u32 %v118, %v134
    %v137 = vor.u32 %v135, %v136
    %v138 = vsub.s32 4294967266, %v133
    %v139 = vadd.s32 %v138, 127
    %v140 = vshll.u32 %v139, 23
    %v141 = vor.u32 4788187, %v140
    %v142 = vand.u32 2147483647, %v141
    %v144 = vcvt.s32.f32 %v137
    %v145 = vmul.f32 %v144, %v142
    %v146 = vxor.u32 %v145, 2147483648
    %v147 = vsel %vm64, %v146, %v145
    %v148 = vsub.s32 4, %v124
    %v149 = vsel %vm64, %v148, %v124
    %v150 = vsel %vm63, %v60, %v147
    %v151 = vsel %vm63, 0, %v149
    %v152 = vcosq.f32.pop %v150
    %v153 = vsinq.f32.pop %v150
    %vm154 = vweird.f32 %v60
    %v155 = vadd.s32 %v151, 3
    %v156 = vand.u32 %v155, 3
    %vm157 = vcmp.lt.s32.totalorder %v156, 2
    %vm158 = vcmp.eq.s32.totalorder %v156, 0
    %v159 = vxor.u32 %v153, 2147483648
    %v160 = vsel %vm158, %v152, %v159
    %vm161 = vcmp.eq.s32.totalorder %v156, 2
    %v162 = vxor.u32 %v152, 2147483648
    %v163 = vsel %vm161, %v162, %v153
    %v164 = vsel %vm157, %v160, %v163
    %v165 = vsel %vm154, nan, %v164
    %v167 = vlaneseq
    %v168 = vshrl.u32 %v167, 7
    %v169 = vsub.s32 0, %v168
    %v170 = vrot.slane %v61, %v169
    %v172 = vmul.f32 %v170, %v165
    %v173 = vsub.f32 1.0, %v61
    %v174 = vand.u32 2147483647, %v60
    %vm175 = vcmp.le.f32.partialorder %v174, 0.7853982
    %vm176 = vcmp.lt.s32.totalorder %v60, 0
    %v177 = vand.u32 %v60, 2139095040
    %v178 = vshrl.u32 %v177, 23
    %v179 = vsub.s32 %v178, 127
    %v180 = vand.u32 2147483647, %v60
    %v181 = vand.u32 %v180, 8388607
    %v182 = vor.u32 %v181, 8388608
    %v183 = vsub.s32 0, %v182
    %v184 = vadd.s32 %v179, 1
    %vm185 = vcmp.gt.s32.totalorder %v184, 0
    %v186 = vsel %vm185, %v184, 0
    %v187 = vshrl.u32 %v186, 5
    %v188 = vand.u32 %v186, 31
    %v189 = vsub.s32 32, %v188
    %v190 = vshrl.u32 683565275, %v189
    %v191 = vshll.u32 683565275, %v188
    %v192 = vshrl.u32 2475754826, %v189
    %v193 = vor.u32 %v191, %v192
    %v194 = vshll.u32 2475754826, %v188
    %v195 = vshrl.u32 2131351028, %v189
    %v196 = vor.u32 %v194, %v195
    %v197 = vshll.u32 2131351028, %v188
    %v198 = vshrl.u32 2102212464, %v189
    %v199 = vor.u32 %v197, %v198
    %v200 = vshll.u32 2102212464, %v188
    %v201 = vshrl.u32 920167782, %v189
    %v202 = vor.u32 %v200, %v201
    %v203 = vshll.u32 920167782, %v188
    %v204 = vshrl.u32 1326507024, %v189
    %v205 = vor.u32 %v203, %v204
    %vm206 = vcmp.lt.s32.totalorder %v187, 1
    %vm207 = vcmp.lt.s32.totalorder %v187, 2
    %vm208 = vcmp.lt.s32.totalorder %v187, 3
    %vm209 = vcmp.lt.s32.totalorder %v187, 4
    %v210 = vsel %vm206, %v190, %v193
    %v211 = vsel %vm209, %v199, 2102212464
    %v212 = vsel %vm208, %v196, %v211
    %v213 = vsel %vm207, %v210, %v212
    %v214 = vsel %vm206, %v193, %v196
    %v215 = vsel %vm209, %v202, 920167782
    %v216 = vsel %vm208, %v199, %v215
    %v217 = vsel %vm207, %v214, %v216
    %v218 = vsel %vm206, %v196, %v199
    %v219 = vsel %vm209, %v205, 1326507024
    %v220 = vsel %vm208, %v202, %v219
    %v221 = vsel %vm207, %v218, %v220
    %v222 = vshll.u32 %v182, 8
    %v223 = vmul.u32.u64.compose %v222, %v221
    %v224 = vextract.low.u32 %v223
    %v225 = vextract.high.u32 %v223
    %v226 = vmul.u32.u64.compose %v222, %v217
    %v227 = vextract.low.u32 %v226
    %v228 = vextract.high.u32 %v226
    %v229 = vmul.u32 %v222, %v213
    %v230 = vadd.s32 %v225, %v227
    %vm231 = vc.u32 %v225, %v227
    %v232 = vadd.s32 %v228, 1
    %v233 = vsel %vm231, %v232, %v228
    %v234 = vadd.s32 %v229, %v233
    %v235 = vadd.s32 %v234, 536870912
    %v236 = vshrl.u32 %v235, 30
    %v237 = vshll.u32 %v236, 30
    %v238 = vsub.s32 %v234, %v237
    %vm239 = vcmp.lt.s32.totalorder %v238, 0
    %v240 = vsub.s32 0, %v238
    %v241 = vsel %vm239, %v240, %v238
    %v242 = vclz %v241
    %v243 = vsub.s32 %v242, 2
    %vm244 = vcmp.gt.s32.totalorder 0, %v243
    %v245 = vsel %vm244, 0, %v243
    %v246 = vsub.s32 32, %v245
    %v247 = vshll.u32 %v238, %v245
    %v248 = vshrl.u32 %v230, %v246
    %v249 = vor.u32 %v247, %v248
    %v250 = vsub.s32 4294967266, %v245
    %v251 = vadd.s32 %v250, 127
    %v252 = vshll.u32 %v251, 23
    %v253 = vor.u32 4788187, %v252
    %v254 = vand.u32 2147483647, %v253
    %v256 = vcvt.s32.f32 %v249
    %v257 = vmul.f32 %v256, %v254
    %v258 = vxor.u32 %v257, 2147483648
    %v259 = vsel %vm176, %v258, %v257
    %v260 = vsub.s32 4, %v236
    %v261 = vsel %vm176, %v260, %v236
    %v262 = vsel %vm175, %v60, %v259
    %v263 = vsel %vm175, 0, %v261
    %v264 = vcosq.f32.pop %v262
    %v265 = vsinq.f32.pop %v262
    %vm266 = vweird.f32 %v60
    %v267 = vand.u32 %v263, 3
    %vm268 = vcmp.lt.s32.totalorder %v267, 2
    %vm269 = vcmp.eq.s32.totalorder %v267, 0
    %v270 = vxor.u32 %v265, 2147483648
    %v271 = vsel %vm269, %v264, %v270
    %vm272 = vcmp.eq.s32.totalorder %v267, 2
    %v273 = vxor.u32 %v264, 2147483648
    %v274 = vsel %vm272, %v273, %v265
    %v275 = vsel %vm268, %v271, %v274
    %v276 = vsel %vm266, nan, %v275
    %v278 = vlaneseq
    %v279 = vshrl.u32 %v278, 7
    %v280 = vsub.s32 0, %v279
    %v281 = vrot.slane %v173, %v280
    %v283 = vmul.f32 %v281, %v276
    %v284 = vadd.f32 %v172, %v283
    %285 = vst [vmem:[#allocation5] sm:$0x3] %v284
    // Predicated region
    $region18: #{tpu_custom_call.1} parent=1 // pred_check
      _
    $region19: #{tpu_custom_call.1} parent=1 // pred_check_branch
      %287 = sbr.rel (0) target = $region21
    $region20: #{tpu_custom_call.1} parent=1 // pred_region
      %s289 = ssub.s32 32, 32
      %290 = vsyncadd [#allocation4], %s289
      %s292 = sshll.u32 [#allocation5], 4
      %s293 = int_to_ptr.vmem [resolvable:$true] %s292
      %295 = dma.vmem_to_hbm [thread:$0]  %s293, 32, %s3, [#allocation4]
    $region21: #{tpu_custom_call.1} parent=1 // pred_fallthru
      _
    // Predicated region
    $region22: #{tpu_custom_call.1} parent=1 // pred_check
      _
    $region23: #{tpu_custom_call.1} parent=1 // pred_check_branch
      %297 = sbr.rel (0) target = $region25
    $region24: #{tpu_custom_call.1} parent=1 // pred_region
      %298 = dma.done [#allocation4], 32
    $region25: #{tpu_custom_call.1} parent=1 // pred_fallthru
      _
    %299 = vsyncpa [#allocation3], 1
    %300 = vsyncpa [#allocation4], 1

</llo_original>
